<compile_context>
chip_gen: v5e
topology: v5e:2x2
jax: 0.10.0
libtpu: 0.0.40
codegen_flags: <defaults>
</compile_context>

<pallas_src>
import jax
import jax.numpy as jnp
from jax import lax
from jax.experimental import pallas as pl
from jax.experimental.pallas import tpu as pltpu

_MIB = 1024 * 1024


def _lm_head_kernel(x_ref, w_ref, o_ref):
    # x_ref: (tile_m, K)   activations tile
    # w_ref: (tile_n, K)   weight tile in PyTorch [vocab, hidden] layout
    # o_ref: (tile_m, tile_n)
    # Contract both operands on their last (hidden) axis: o = x @ w.T,
    # accumulated in f32 on the MXU.
    o_ref[...] = lax.dot_general(
        x_ref[...],
        w_ref[...],
        dimension_numbers=(((1,), (1,)), ((), ())),
        preferred_element_type=jnp.float32,
    ).astype(o_ref.dtype)


def _round_down(v: int, m: int) -> int:
    return max(m, (v // m) * m)


def _tpu_generation_defaults():
    """Return (tile_m, tile_n, vmem_limit_bytes) tuned per TPU generation."""
    kind = ""
    try:
        kind = jax.devices()[0].device_kind.lower()
    except Exception:
        pass

    if "v6" in kind:
        # v6e: 128 MiB VMEM, ridge ~680 FLOP/byte -> big M-tiles for weight reuse.
        tile_m, tile_n, vmem = 1024, 512, 96 * _MIB
    elif "v7" in kind or "tpu7" in kind:
        # v7x: only 64 MiB VMEM, ridge ~311 FLOP/byte -> tile_m ~512 already clears it.
        tile_m, tile_n, vmem = 512, 512, 52 * _MIB
    elif "v5e" in kind or "v5 lite" in kind or "v5lite" in kind:
        # v5e: ridge ~240 FLOP/byte; win is fewer, wider grid steps.
        tile_m, tile_n, vmem = 256, 1024, 96 * _MIB
    else:
        # Unknown / older generation: keep the previously known-good conservative budget.
        tile_m, tile_n, vmem = 512, 512, 48 * _MIB

    # Never request more scoped VMEM than the chip physically has.
    try:
        cap = getattr(pltpu.get_tpu_info(), "vmem_capacity_bytes", None)
        if cap:
            vmem = min(vmem, int(cap * 0.85))
    except Exception:
        pass
    return tile_m, tile_n, vmem


def _fit_tiles_to_vmem(tile_m, tile_n, K, x_bytes, w_bytes, o_bytes, vmem_limit):
    """Shrink tiles until the double-buffered working set fits the VMEM budget.

    Prefers shrinking tile_n first (weight reuse depends on tile_m, not tile_n),
    keeping tile_n a multiple of 128 and tile_m a multiple of 8 so shrunk tiles
    remain layout-legal even when they no longer span the full array.
    """
    budget = int(vmem_limit * 0.85)  # headroom for compiler scratch / semaphores

    def footprint(tm, tn):
        # Double-buffered x tile + weight tile + output tile.
        return 2 * (tm * K * x_bytes + tn * K * w_bytes + tm * tn * o_bytes)

    while footprint(tile_m, tile_n) > budget:
        if tile_n > 256:
            tile_n = _round_down(max(tile_n // 2, 256), 128)
        elif tile_m > 128:
            tile_m = _round_down(max(tile_m // 2, 128), 8)
        elif tile_n > 128:
            tile_n = 128
        elif tile_m > 8:
            tile_m = _round_down(tile_m // 2, 8)
        else:
            break
    return tile_m, tile_n


def lm_head_embedding_layer(
    hidden_states: jax.Array,
    weight: jax.Array,
    *,
    tile_m=None,
    tile_n=None,
    out_dtype=None,
    compute_dtype=None,
    vmem_limit_bytes=None,
) -> jax.Array:
    """Forward of LMHeadEmbeddingLayer: logits = hidden_states @ weight.T.

    hidden_states: [batch, seq, hidden]
    weight:        [vocab, hidden]   (PyTorch nn.Linear / tied-embedding layout)
    returns:       [batch, seq, vocab] logits (default dtype = hidden_states.dtype,
                   i.e. bf16 logits with f32 in-kernel accumulation in production)
    """
    batch, seq, hidden = hidden_states.shape
    vocab, hidden_w = weight.shape
    assert hidden_w == hidden, "weight hidden dim must match hidden_states"

    if compute_dtype is not None:
        # Optional (perf): cast f32 activations to bf16 to halve the x DMA stream
        # and use the native bf16 MXU path. Off by default to preserve the exact
        # numerics of the original module for f32 inputs.
        hidden_states = hidden_states.astype(compute_dtype)
        weight = weight.astype(compute_dtype)
    if out_dtype is None:
        out_dtype = hidden_states.dtype

    x = hidden_states.reshape(batch * seq, hidden)  # (M, K) — pure reshape, no copy
    M, K = x.shape
    N = vocab

    auto_m, auto_n, auto_vmem = _tpu_generation_defaults()
    if vmem_limit_bytes is None:
        vmem_limit_bytes = auto_vmem
    auto_tiles = tile_m is None and tile_n is None
    if tile_m is None:
        tile_m = auto_m
    if tile_n is None:
        tile_n = auto_n

    # Decode / small-M fast path: weight is already read exactly once, so widen
    # the vocab tiles instead (fewer grid steps, wider unmasked lane-dense stores).
    if auto_tiles and M <= tile_m:
        tile_m = M
        tile_n = max(tile_n, 1024)

    # Clamp to the problem, then shrink until the double-buffered working set
    # fits the VMEM budget (guards large hidden dims, esp. v7x's 64 MiB VMEM).
    tile_m = min(tile_m, M)
    tile_n = min(tile_n, N)
    xb = jnp.dtype(x.dtype).itemsize
    wb = jnp.dtype(weight.dtype).itemsize
    ob = jnp.dtype(out_dtype).itemsize
    tile_m, tile_n = _fit_tiles_to_vmem(tile_m, tile_n, K, xb, wb, ob, vmem_limit_bytes)
    tile_m = min(tile_m, M)
    tile_n = min(tile_n, N)

    grid_m = pl.cdiv(M, tile_m)
    grid_n = pl.cdiv(N, tile_n)

    # Truthful HBM-traffic estimate: the full weight is streamed once per M-tile,
    # activations read once, logits written once.
    cost = pl.CostEstimate(
        flops=2 * M * N * K,
        transcendentals=0,
        bytes_accessed=(M * K * xb + grid_m * N * K * wb + M * N * ob),
    )

    out = pl.pallas_call(
        _lm_head_kernel,
        out_shape=jax.ShapeDtypeStruct((M, N), out_dtype),
        grid_spec=pltpu.PrefetchScalarGridSpec(
            num_scalar_prefetch=0,
            grid=(grid_m, grid_n),  # vocab (j) is the fast/inner axis
            in_specs=[
                # x tile: constant along j -> stays resident while weight streams
                pl.BlockSpec((tile_m, K), lambda i, j: (i, 0)),
                # weight tile streamed in its native [vocab, hidden] layout
                pl.BlockSpec((tile_n, K), lambda i, j: (j, 0)),
            ],
            out_specs=pl.BlockSpec((tile_m, tile_n), lambda i, j: (i, j)),
        ),
        compiler_params=pltpu.CompilerParams(
            # Both axes are independent -> megacore / 2-TC sharding on either.
            # TODO(synk): verify with a trace that v7x shards the vocab axis in
            # the small-M decode regime (disjoint weight halves per core).
            dimension_semantics=("parallel", "parallel"),
            vmem_limit_bytes=vmem_limit_bytes,
        ),
        cost_estimate=cost,
    )(x, weight)

    return out.reshape(batch, seq, vocab)


if __name__ == "__main__":
    key = jax.random.PRNGKey(0)
    k_x, k_w, k_x2, k_w2 = jax.random.split(key, 4)

    # --- Test 1: small f32, divisible shapes, auto (generation-aware) tiling.
    # hidden_states [batch=2, seq=8, hidden=128]; vocab=256.
    batch, seq, hidden, vocab = 2, 8, 128, 256
    hidden_states = jax.random.normal(k_x, (batch, seq, hidden), dtype=jnp.float32)
    weight = jax.random.normal(k_w, (vocab, hidden), dtype=jnp.float32) * 0.02

    logits = lm_head_embedding_layer(hidden_states, weight)
    logits = jax.block_until_ready(logits)
    ref = jnp.einsum("bsh,vh->bsv", hidden_states, weight)
    assert logits.shape == (batch, seq, vocab)
    assert logits.dtype == jnp.float32
    assert jnp.allclose(logits, ref, atol=1e-4, rtol=1e-4)

    # --- Test 2: bf16 inputs with non-divisible M (72 vs tile_m=64) and vocab
    # (640 vs tile_n=512) -> exercises partial edge tiles on both grid axes and
    # the bf16-logits (halved writeback) path.
    batch2, seq2, hidden2, vocab2 = 1, 72, 128, 640
    hs2 = jax.random.normal(k_x2, (batch2, seq2, hidden2), dtype=jnp.float32).astype(jnp.bfloat16)
    w2 = (jax.random.normal(k_w2, (vocab2, hidden2), dtype=jnp.float32) * 0.02).astype(jnp.bfloat16)

    logits2 = lm_head_embedding_layer(hs2, w2, tile_m=64, tile_n=512)
    logits2 = jax.block_until_ready(logits2)
    ref2 = jnp.einsum("bsh,vh->bsv", hs2.astype(jnp.float32), w2.astype(jnp.float32))
    assert logits2.shape == (batch2, seq2, vocab2)
    assert logits2.dtype == jnp.bfloat16
    assert jnp.allclose(logits2.astype(jnp.float32), ref2, atol=5e-2, rtol=5e-2)

    print("KERNEL_OK")
</pallas_src>

<mosaic_0001>
module attributes {stable_mosaic.version = 11 : i64} {
  func.func @_lm_head_kernel(%arg0: i32, %arg1: i32, %arg2: memref<16x128xf32, #tpu.memory_space<vmem>>, %arg3: memref<256x128xf32, #tpu.memory_space<vmem>>, %arg4: memref<16x256xf32, #tpu.memory_space<vmem>>) attributes {dimension_semantics = [#tpu.dimension_semantics<parallel>, #tpu.dimension_semantics<parallel>], iteration_bounds = array<i64: 1, 1>, scalar_prefetch = 0 : i64, scratch_operands = 0 : i64, tpu.core_type = #tpu.core_type<tc>, window_params = [{transform_indices = @transform_0, window_bounds = array<i64: 16, 128>}, {transform_indices = @transform_1, window_bounds = array<i64: 256, 128>}, {transform_indices = @transform_2, window_bounds = array<i64: 16, 256>}]} {
    %c0 = arith.constant 0 : index
    %c0_0 = arith.constant 0 : index
    %0 = vector.load %arg2[%c0, %c0_0] : memref<16x128xf32, #tpu.memory_space<vmem>>, vector<16x128xf32>
    %c0_1 = arith.constant 0 : index
    %c0_2 = arith.constant 0 : index
    %1 = vector.load %arg3[%c0_1, %c0_2] : memref<256x128xf32, #tpu.memory_space<vmem>>, vector<256x128xf32>
    %cst = arith.constant dense<0.000000e+00> : vector<16x256xf32>
    %2 = tpu.matmul %0, %1, %cst {dimension_numbers = #tpu.dot_dimension_numbers<[1], [1], [0], [0], [0, 0, 1, 0], [], []>} : vector<16x128xf32>, vector<256x128xf32>, vector<16x256xf32> -> vector<16x256xf32>
    %c0_3 = arith.constant 0 : index
    %c0_4 = arith.constant 0 : index
    %3 = vector.load %arg4[%c0_3, %c0_4] : memref<16x256xf32, #tpu.memory_space<vmem>>, vector<16x256xf32>
    tpu.vector_store %arg4[%c0_3, %c0_4], %2 {strides = array<i32>} : memref<16x256xf32, #tpu.memory_space<vmem>>, vector<16x256xf32>,
    return
  }
  func.func @transform_0(%arg0: i32, %arg1: i32) -> (i32, i32) {
    %c0_i32 = arith.constant 0 : i32
    %c0_i32_0 = arith.constant 0 : i32
    return %arg0, %c0_i32 : i32, i32
  }
  func.func @transform_1(%arg0: i32, %arg1: i32) -> (i32, i32) {
    %c0_i32 = arith.constant 0 : i32
    %c0_i32_0 = arith.constant 0 : i32
    return %arg1, %c0_i32 : i32, i32
  }
  func.func @transform_2(%arg0: i32, %arg1: i32) -> (i32, i32) {
    %c0_i32 = arith.constant 0 : i32
    return %arg0, %arg1 : i32, i32
  }
}

</mosaic_0001>

<llo_original>
// kernel: tpu_custom_call.1
$region0: #{tpu_custom_call.1}
  #allocation0 [shape = 'u32[]', space=smem, size = 0x4, offset = 0x4, fixed_abs, tag = 'smem constant byte address 0x4 - core index']
  #allocation1 [shape = 'u32[72,128]{1,0:T(1,128)}', space=vmem, size = 0x9000, scoped, tag = 'internal scratch']
  %s0 = inlined_call_operand.hbm [shape: f32[16,128], index: 0, kind: input, shape index: {}]
  %s1 = inlined_call_operand.hbm [shape: f32[256,128], index: 1, kind: input, shape index: {}]
  %s2 = inlined_call_operand.hbm [shape: f32[16,256], index: 2, kind: output, shape index: {}]
  %s3 = sld [smem:[#allocation0]]
  $region26: #{tpu_custom_call.1} parent=0
    _
  %s5 = ssub.s32 1, %s3
  %s6 = scalar_select 0, %s5, %s3
  $region1: #{tpu_custom_call.1} parent=0
    #allocation2 [shape = 'u8[8192]{0}', space=vmem, size = 0x2000, scoped, tag = 'input window, operand 0, single buffered']
    #allocation3 [shape = 's32[1]{0}', space=sflag, size = 0x4, scoped, tag = 'scoped memory for tpu_custom_call.1']
    #allocation4 [shape = 's32[1]{0}', space=sflag, size = 0x4, scoped, tag = 'scoped memory for tpu_custom_call.1']
    #allocation5 [shape = 'u8[131072]{0}', space=vmem, size = 0x20000, scoped, tag = 'input window, operand 1, single buffered']
    #allocation6 [shape = 's32[1]{0}', space=sflag, size = 0x4, scoped, tag = 'scoped memory for tpu_custom_call.1']
    #allocation7 [shape = 'u8[16384]{0}', space=vmem, size = 0x4000, scoped, tag = 'output window, operand 0, single buffered']
    %7 = vsyncpa [#allocation3], 0
    %8 = vsyncpa [#allocation6], 0
    %9 = vsyncpa [#allocation4], 0
    // Predicated region
    $region2: #{tpu_custom_call.1} parent=1 // pred_check
      _
    $region3: #{tpu_custom_call.1} parent=1 // pred_check_branch
      %11 = sbr.rel (0) target = $region5
    $region4: #{tpu_custom_call.1} parent=1 // pred_region
      %13 = vsyncadd [#allocation3], 0
      %s14 = sshll.u32 %s0, 4
      %s15 = int_to_ptr.hbm [resolvable:$true] %s14
      %s16 = sshll.u32 [#allocation2], 4
      %s17 = int_to_ptr.vmem [resolvable:$true] %s16
      %22 = dma.hbm_to_vmem [thread:$0]  %s15, 256, %s17, [#allocation3], 128, 128, 8
    $region5: #{tpu_custom_call.1} parent=1 // pred_fallthru
      _
    // Predicated region
    $region6: #{tpu_custom_call.1} parent=1 // pred_check
      _
    $region7: #{tpu_custom_call.1} parent=1 // pred_check_branch
      %24 = sbr.rel (0) target = $region9
    $region8: #{tpu_custom_call.1} parent=1 // pred_region
      %26 = vsyncadd [#allocation6], 0
      %s27 = sshll.u32 %s1, 4
      %s28 = int_to_ptr.hbm [resolvable:$true] %s27
      %s29 = sshll.u32 [#allocation5], 4
      %s30 = int_to_ptr.vmem [resolvable:$true] %s29
      %35 = dma.hbm_to_vmem [thread:$0]  %s28, 4096, %s30, [#allocation6], 128, 128, 8
    $region9: #{tpu_custom_call.1} parent=1 // pred_fallthru
      _
    // Predicated region
    $region10: #{tpu_custom_call.1} parent=1 // pred_check
      _
    $region11: #{tpu_custom_call.1} parent=1 // pred_check_branch
      %37 = sbr.rel (0) target = $region13
    $region12: #{tpu_custom_call.1} parent=1 // pred_region
      %39 = dma.done [#allocation3], 256
    $region13: #{tpu_custom_call.1} parent=1 // pred_fallthru
      _
    // Predicated region
    $region14: #{tpu_custom_call.1} parent=1 // pred_check
      _
    $region15: #{tpu_custom_call.1} parent=1 // pred_check_branch
      %41 = sbr.rel (0) target = $region17
    $region16: #{tpu_custom_call.1} parent=1 // pred_region
      %43 = dma.done [#allocation6], 4096
    $region17: #{tpu_custom_call.1} parent=1 // pred_fallthru
      _
    %v44 = vld [vmem:[#allocation2] sm:$0xff]
    %v45 = vld [vmem:[#allocation2 + $0x8] sm:$0xff]
    %v46 = vld [vmem:[#allocation5] sm:$0xff]
    %v47 = vld [vmem:[#allocation5 + $0x8] sm:$0xff]
    %v48 = vld [vmem:[#allocation5 + $0x10] sm:$0xff]
    %v49 = vld [vmem:[#allocation5 + $0x18] sm:$0xff]
    %v50 = vld [vmem:[#allocation5 + $0x20] sm:$0xff]
    %v51 = vld [vmem:[#allocation5 + $0x28] sm:$0xff]
    %v52 = vld [vmem:[#allocation5 + $0x30] sm:$0xff]
    %v53 = vld [vmem:[#allocation5 + $0x38] sm:$0xff]
    %v54 = vld [vmem:[#allocation5 + $0x40] sm:$0xff]
    %v55 = vld [vmem:[#allocation5 + $0x48] sm:$0xff]
    %v56 = vld [vmem:[#allocation5 + $0x50] sm:$0xff]
    %v57 = vld [vmem:[#allocation5 + $0x58] sm:$0xff]
    %v58 = vld [vmem:[#allocation5 + $0x60] sm:$0xff]
    %v59 = vld [vmem:[#allocation5 + $0x68] sm:$0xff]
    %v60 = vld [vmem:[#allocation5 + $0x70] sm:$0xff]
    %v61 = vld [vmem:[#allocation5 + $0x78] sm:$0xff]
    %v62 = vld [vmem:[#allocation5 + $0x80] sm:$0xff]
    %v63 = vld [vmem:[#allocation5 + $0x88] sm:$0xff]
    %v64 = vld [vmem:[#allocation5 + $0x90] sm:$0xff]
    %v65 = vld [vmem:[#allocation5 + $0x98] sm:$0xff]
    %v66 = vld [vmem:[#allocation5 + $0xa0] sm:$0xff]
    %v67 = vld [vmem:[#allocation5 + $0xa8] sm:$0xff]
    %v68 = vld [vmem:[#allocation5 + $0xb0] sm:$0xff]
    %v69 = vld [vmem:[#allocation5 + $0xb8] sm:$0xff]
    %v70 = vld [vmem:[#allocation5 + $0xc0] sm:$0xff]
    %v71 = vld [vmem:[#allocation5 + $0xc8] sm:$0xff]
    %v72 = vld [vmem:[#allocation5 + $0xd0] sm:$0xff]
    %v73 = vld [vmem:[#allocation5 + $0xd8] sm:$0xff]
    %v74 = vld [vmem:[#allocation5 + $0xe0] sm:$0xff]
    %v75 = vld [vmem:[#allocation5 + $0xe8] sm:$0xff]
    %v76 = vld [vmem:[#allocation5 + $0xf0] sm:$0xff]
    %v77 = vld [vmem:[#allocation5 + $0xf8] sm:$0xff]
    %78 = vmatpush.xpose.msra.mxu0 %v61
    %79 = vmatpush.xpose.msra.mxu0 %v60
    %80 = vmatpush.xpose.msra.mxu0 %v59
    %81 = vmatpush.xpose.msra.mxu0 %v58
    %82 = vmatpush.xpose.msra.mxu0 %v57
    %83 = vmatpush.xpose.msra.mxu0 %v56
    %84 = vmatpush.xpose.msra.mxu0 %v55
    %85 = vmatpush.xpose.msra.mxu0 %v54
    %86 = vmatpush.xpose.msra.mxu0 %v53
    %87 = vmatpush.xpose.msra.mxu0 %v52
    %88 = vmatpush.xpose.msra.mxu0 %v51
    %89 = vmatpush.xpose.msra.mxu0 %v50
    %90 = vmatpush.xpose.msra.mxu0 %v49
    %91 = vmatpush.xpose.msra.mxu0 %v48
    %92 = vmatpush.xpose.msra.mxu0 %v47
    %93 = vmatpush.xpose.msra.mxu0 %v46
    %94 = vmatmul.f32.gmra.mxu0 %v44
    %v95 = vpop.f32.mrf.mxu0
    %v96 = vadd.f32 0.0, %v95
    %97 = vmatmul.f32.gmra.mxu0 %v45
    %v98 = vpop.f32.mrf.mxu0
    %v99 = vadd.f32 0.0, %v98
    %100 = vdwg.mxu0
    %101 = vmatpush.xpose.msra.mxu0 %v77
    %102 = vmatpush.xpose.msra.mxu0 %v76
    %103 = vmatpush.xpose.msra.mxu0 %v75
    %104 = vmatpush.xpose.msra.mxu0 %v74
    %105 = vmatpush.xpose.msra.mxu0 %v73
    %106 = vmatpush.xpose.msra.mxu0 %v72
    %107 = vmatpush.xpose.msra.mxu0 %v71
    %108 = vmatpush.xpose.msra.mxu0 %v70
    %109 = vmatpush.xpose.msra.mxu0 %v69
    %110 = vmatpush.xpose.msra.mxu0 %v68
    %111 = vmatpush.xpose.msra.mxu0 %v67
    %112 = vmatpush.xpose.msra.mxu0 %v66
    %113 = vmatpush.xpose.msra.mxu0 %v65
    %114 = vmatpush.xpose.msra.mxu0 %v64
    %115 = vmatpush.xpose.msra.mxu0 %v63
    %116 = vmatpush.xpose.msra.mxu0 %v62
    %117 = vmatmul.f32.gmra.mxu0 %v44
    %v118 = vpop.f32.mrf.mxu0
    %v119 = vadd.f32 0.0, %v118
    %120 = vmatmul.f32.gmra.mxu0 %v45
    %v121 = vpop.f32.mrf.mxu0
    %v122 = vadd.f32 0.0, %v121
    %123 = vdwg.mxu0
    %124 = vst [vmem:[#allocation7] sm:$0xff] %v96
    %125 = vst [vmem:[#allocation7 + $0x8] sm:$0xff] %v119
    %126 = vst [vmem:[#allocation7 + $0x10] sm:$0xff] %v99
    %127 = vst [vmem:[#allocation7 + $0x18] sm:$0xff] %v122
    // Predicated region
    $region18: #{tpu_custom_call.1} parent=1 // pred_check
      _
    $region19: #{tpu_custom_call.1} parent=1 // pred_check_branch
      %129 = sbr.rel (0) target = $region21
    $region20: #{tpu_custom_call.1} parent=1 // pred_region
      %131 = vsyncadd [#allocation4], 0
      %s132 = sshll.u32 [#allocation7], 4
      %s133 = int_to_ptr.vmem [resolvable:$true] %s132
      %s134 = sshll.u32 %s2, 4
      %s135 = int_to_ptr.hbm [resolvable:$true] %s134
      %140 = dma.vmem_to_hbm [thread:$0]  %s133, 512, %s135, [#allocation4], 256, 256, 16
    $region21: #{tpu_custom_call.1} parent=1 // pred_fallthru
      _
    // Predicated region
    $region22: #{tpu_custom_call.1} parent=1 // pred_check
      _
    $region23: #{tpu_custom_call.1} parent=1 // pred_check_branch
      %142 = sbr.rel (0) target = $region25
    $region24: #{tpu_custom_call.1} parent=1 // pred_region
      %144 = dma.done [#allocation4], 512
    $region25: #{tpu_custom_call.1} parent=1 // pred_fallthru
      _
    %145 = vsyncpa [#allocation3], 1
    %146 = vsyncpa [#allocation6], 1
    %147 = vsyncpa [#allocation4], 1

</llo_original>
